<compile_context>
chip_gen: v6e
topology: v6e:2x2x1
jax: 0.10.0
libtpu: 0.0.40
codegen_flags: <defaults>
</compile_context>

<pallas_src>
import jax
import jax.numpy as jnp
from jax.experimental import pallas as pl
from jax.experimental.pallas import tpu as pltpu

INPUT_SIZE = 2
HIDDEN_SIZE = 16
N_HIDDEN_LAYERS = 7


def dnn_kernel(x_ref, w_in_ref, b_in_ref, w_h_ref, b_h_ref, w_out_ref, b_out_ref, o_ref):
    # x_ref: [INPUT_SIZE, B_TILE]   (batch on the lane axis)
    x = x_ref[...]

    # Input layer (NO activation, matching the PyTorch forward). The K=2
    # contraction is done on the VPU as two broadcast multiply-adds instead of
    # wasting an MXU weight push + result-FIFO pop on an already serialized
    # 9-matmul chain:  h[j, c] = W[j,0]*x[0,c] + W[j,1]*x[1,c] + b[j]
    w_in = w_in_ref[...]                              # [16, 2]
    h = (w_in[:, 0:1] * x[0:1, :]                     # [16,1] * [1,b] -> [16,b]
         + w_in[:, 1:2] * x[1:2, :]
         + b_in_ref[...])                             # [16,1] lane-broadcast

    # 7 hidden layers with tanh, statically unrolled (tiny, data-dependent
    # chain; unrolling gives the scheduler full MXU/EUP/VPU overlap visibility).
    for i in range(N_HIDDEN_LAYERS):
        h = jnp.tanh(
            jnp.dot(w_h_ref[i], h, preferred_element_type=jnp.float32) + b_h_ref[i]
        )

    # Output layer (no activation): [1, B_TILE] -> lane-dense store.
    out = jnp.dot(w_out_ref[...], h, preferred_element_type=jnp.float32) + b_out_ref[...]
    o_ref[...] = out.astype(o_ref.dtype)


def dnn_forward(x, params, b_tile=2048):
    """x: [B, INPUT_SIZE] f32 -> [B, 1] f32."""
    w_in, b_in, w_h, b_h, w_out, b_out = params
    B = x.shape[0]

    # Batch tile: multiple of 128 lanes. The real ceiling is the 256 KiB vreg
    # file (live activations ~ 2 * 16 * b_tile * 4 B), not VMEM: at b_tile=2048
    # the double-buffered x/out tiles plus padded weights are < 100 KiB, far
    # under even v7x's 64 MiB VMEM. ~1536-2048 lanes is the zero-spill sweet
    # spot; sweep 1024-4096 and check vld/vst slot_util before going larger.
    b_tile = int(b_tile)
    b_tile = max(128, min(((b_tile + 127) // 128) * 128, 4096))
    b_tile = min(b_tile, ((B + 127) // 128) * 128)
    # Guarantee >= 2 grid steps for mid/large batches so v7x's two TensorCores
    # both get work (batch axis marked "parallel"); weights are only ~7 KiB so
    # re-DMA per core is negligible. Harmless on single-TC v5e/v6e.
    if B >= 256:
        half = max(128, (((B + 1) // 2 + 127) // 128) * 128)
        b_tile = min(b_tile, half)
    Bp = ((B + b_tile - 1) // b_tile) * b_tile
    grid = (Bp // b_tile,)

    # Wrapper-side layout plumbing: pad the batch, then transpose to
    # [features, B]. Pad-of-transpose avoids the zeros+set full-buffer rewrite.
    xT = jnp.pad(x, ((0, Bp - B), (0, 0))).T

    out_T = pl.pallas_call(
        dnn_kernel,
        out_shape=jax.ShapeDtypeStruct((1, Bp), jnp.float32),
        grid=grid,
        in_specs=[
            # activations: one batch tile per grid step
            pl.BlockSpec((INPUT_SIZE, b_tile), lambda i: (0, i)),
            # parameters: constant index_map -> resident across grid steps
            pl.BlockSpec((HIDDEN_SIZE, INPUT_SIZE), lambda i: (0, 0)),            # w_in  [16, 2]
            pl.BlockSpec((HIDDEN_SIZE, 1), lambda i: (0, 0)),                     # b_in  [16, 1]
            pl.BlockSpec((N_HIDDEN_LAYERS, HIDDEN_SIZE, HIDDEN_SIZE),
                         lambda i: (0, 0, 0)),                                    # w_h   [7, 16, 16]
            pl.BlockSpec((N_HIDDEN_LAYERS, HIDDEN_SIZE, 1), lambda i: (0, 0, 0)), # b_h   [7, 16, 1]
            pl.BlockSpec((1, HIDDEN_SIZE), lambda i: (0, 0)),                     # w_out [1, 16]
            pl.BlockSpec((1, 1), lambda i: (0, 0)),                               # b_out [1, 1]
        ],
        out_specs=pl.BlockSpec((1, b_tile), lambda i: (0, i)),
        compiler_params=pltpu.CompilerParams(
            dimension_semantics=("parallel",),
        ),
    )(xT, w_in, b_in, w_h, b_h, w_out, b_out)

    # back to the PyTorch-facing layout [B, 1]
    return out_T[:, :B].T


def init_params(key):
    """Deterministic init mimicking nn.Linear default: U(-1/sqrt(fan_in), +1/sqrt(fan_in)).

    Weights are stored PyTorch-native [out, in]; biases as [out, 1] columns
    (lane-broadcast-friendly in the batch-on-lanes layout).
    """
    ks = jax.random.split(key, 6)

    def uniform(k, shape, fan_in):
        bound = 1.0 / jnp.sqrt(float(fan_in))
        return jax.random.uniform(k, shape, jnp.float32, -bound, bound)

    w_in = uniform(ks[0], (HIDDEN_SIZE, INPUT_SIZE), INPUT_SIZE)
    b_in = uniform(ks[1], (HIDDEN_SIZE, 1), INPUT_SIZE)
    w_h = uniform(ks[2], (N_HIDDEN_LAYERS, HIDDEN_SIZE, HIDDEN_SIZE), HIDDEN_SIZE)
    b_h = uniform(ks[3], (N_HIDDEN_LAYERS, HIDDEN_SIZE, 1), HIDDEN_SIZE)
    w_out = uniform(ks[4], (1, HIDDEN_SIZE), HIDDEN_SIZE)
    b_out = uniform(ks[5], (1, 1), HIDDEN_SIZE)
    return (w_in, b_in, w_h, b_h, w_out, b_out)


def reference_forward(x, params):
    """Pure-JAX reference of the same forward pass (PyTorch semantics: y = x @ W.T + b)."""
    w_in, b_in, w_h, b_h, w_out, b_out = params
    h = x @ w_in.T + b_in.reshape(1, -1)
    for i in range(N_HIDDEN_LAYERS):
        h = jnp.tanh(h @ w_h[i].T + b_h[i].reshape(1, -1))
    return h @ w_out.T + b_out.reshape(1, -1)


if __name__ == "__main__":
    key = jax.random.PRNGKey(0)
    k_param, k_x = jax.random.split(key)

    params = init_params(k_param)
    batch = 8
    x = jax.random.normal(k_x, (batch, INPUT_SIZE), jnp.float32)

    out = dnn_forward(x, params)
    out = jax.block_until_ready(out)

    ref = reference_forward(x, params)
    assert out.shape == (batch, 1)
    assert jnp.allclose(out, ref, atol=1e-5, rtol=1e-5)

    print("KERNEL_OK")
</pallas_src>

<mosaic_0001>
module attributes {stable_mosaic.version = 11 : i64} {
  func.func @dnn_kernel(%arg0: i32, %arg1: memref<2x128xf32, #tpu.memory_space<vmem>>, %arg2: memref<16x2xf32, #tpu.memory_space<vmem>>, %arg3: memref<16x1xf32, #tpu.memory_space<vmem>>, %arg4: memref<7x16x16xf32, #tpu.memory_space<vmem>>, %arg5: memref<7x16x1xf32, #tpu.memory_space<vmem>>, %arg6: memref<1x16xf32, #tpu.memory_space<vmem>>, %arg7: memref<1x1xf32, #tpu.memory_space<vmem>>, %arg8: memref<1x128xf32, #tpu.memory_space<vmem>>) attributes {dimension_semantics = [#tpu.dimension_semantics<parallel>], iteration_bounds = array<i64: 1>, scalar_prefetch = 0 : i64, scratch_operands = 0 : i64, tpu.core_type = #tpu.core_type<tc>, window_params = [{transform_indices = @transform_0, window_bounds = array<i64: 2, 128>}, {pipeline_mode = #tpu.pipeline_mode<synchronous>, transform_indices = @transform_1, window_bounds = array<i64: 16, 2>}, {pipeline_mode = #tpu.pipeline_mode<synchronous>, transform_indices = @transform_2, window_bounds = array<i64: 16, 1>}, {pipeline_mode = #tpu.pipeline_mode<synchronous>, transform_indices = @transform_3, window_bounds = array<i64: 7, 16, 16>}, {pipeline_mode = #tpu.pipeline_mode<synchronous>, transform_indices = @transform_4, window_bounds = array<i64: 7, 16, 1>}, {pipeline_mode = #tpu.pipeline_mode<synchronous>, transform_indices = @transform_5, window_bounds = array<i64: 1, 16>}, {pipeline_mode = #tpu.pipeline_mode<synchronous>, transform_indices = @transform_6, window_bounds = array<i64: 1, 1>}, {transform_indices = @transform_7, window_bounds = array<i64: 1, 128>}]} {
    %c0 = arith.constant 0 : index
    %c0_0 = arith.constant 0 : index
    %0 = vector.load %arg1[%c0, %c0_0] : memref<2x128xf32, #tpu.memory_space<vmem>>, vector<2x128xf32>
    %c0_1 = arith.constant 0 : index
    %c0_2 = arith.constant 0 : index
    %1 = vector.load %arg2[%c0_1, %c0_2] : memref<16x2xf32, #tpu.memory_space<vmem>>, vector<16x2xf32>
    %2 = vector.extract_strided_slice %1 {offsets = [0, 0], sizes = [16, 1], strides = [1, 1]} : vector<16x2xf32> to vector<16x1xf32>
    %3 = vector.extract_strided_slice %0 {offsets = [0, 0], sizes = [1, 128], strides = [1, 1]} : vector<2x128xf32> to vector<1x128xf32>
    %4 = vector.broadcast %2 : vector<16x1xf32> to vector<16x128xf32>
    %5 = vector.broadcast %3 : vector<1x128xf32> to vector<16x128xf32>
    %6 = arith.mulf %4, %5 : vector<16x128xf32>
    %7 = vector.extract_strided_slice %1 {offsets = [0, 1], sizes = [16, 1], strides = [1, 1]} : vector<16x2xf32> to vector<16x1xf32>
    %8 = vector.extract_strided_slice %0 {offsets = [1, 0], sizes = [1, 128], strides = [1, 1]} : vector<2x128xf32> to vector<1x128xf32>
    %9 = vector.broadcast %7 : vector<16x1xf32> to vector<16x128xf32>
    %10 = vector.broadcast %8 : vector<1x128xf32> to vector<16x128xf32>
    %11 = arith.mulf %9, %10 : vector<16x128xf32>
    %12 = arith.addf %6, %11 : vector<16x128xf32>
    %c0_3 = arith.constant 0 : index
    %c0_4 = arith.constant 0 : index
    %13 = vector.load %arg3[%c0_3, %c0_4] : memref<16x1xf32, #tpu.memory_space<vmem>>, vector<16x1xf32>
    %14 = vector.broadcast %13 : vector<16x1xf32> to vector<16x128xf32>
    %15 = arith.addf %12, %14 : vector<16x128xf32>
    %c0_5 = arith.constant 0 : index
    %c0_6 = arith.constant 0 : index
    %c0_7 = arith.constant 0 : index
    %16 = vector.load %arg4[%c0_5, %c0_6, %c0_7] : memref<7x16x16xf32, #tpu.memory_space<vmem>>, vector<1x16x16xf32>
    %17 = vector.shape_cast %16 : vector<1x16x16xf32> to vector<16x16xf32>
    %cst = arith.constant dense<0.000000e+00> : vector<16x128xf32>
    %18 = tpu.matmul %17, %15, %cst {dimension_numbers = #tpu.dot_dimension_numbers<[1], [0], [0], [1], [0, 0, 1, 1], [], []>} : vector<16x16xf32>, vector<16x128xf32>, vector<16x128xf32> -> vector<16x128xf32>
    %c0_8 = arith.constant 0 : index
    %c0_9 = arith.constant 0 : index
    %c0_10 = arith.constant 0 : index
    %19 = vector.load %arg5[%c0_8, %c0_9, %c0_10] : memref<7x16x1xf32, #tpu.memory_space<vmem>>, vector<1x16x1xf32>
    %20 = vector.shape_cast %19 : vector<1x16x1xf32> to vector<16x1xf32>
    %21 = vector.broadcast %20 : vector<16x1xf32> to vector<16x128xf32>
    %22 = arith.addf %18, %21 : vector<16x128xf32>
    %23 = math.tanh %22 : vector<16x128xf32>
    %c1 = arith.constant 1 : index
    %c0_11 = arith.constant 0 : index
    %c0_12 = arith.constant 0 : index
    %24 = vector.load %arg4[%c1, %c0_11, %c0_12] : memref<7x16x16xf32, #tpu.memory_space<vmem>>, vector<1x16x16xf32>
    %25 = vector.shape_cast %24 : vector<1x16x16xf32> to vector<16x16xf32>
    %cst_13 = arith.constant dense<0.000000e+00> : vector<16x128xf32>
    %26 = tpu.matmul %25, %23, %cst_13 {dimension_numbers = #tpu.dot_dimension_numbers<[1], [0], [0], [1], [0, 0, 1, 1], [], []>} : vector<16x16xf32>, vector<16x128xf32>, vector<16x128xf32> -> vector<16x128xf32>
    %c1_14 = arith.constant 1 : index
    %c0_15 = arith.constant 0 : index
    %c0_16 = arith.constant 0 : index
    %27 = vector.load %arg5[%c1_14, %c0_15, %c0_16] : memref<7x16x1xf32, #tpu.memory_space<vmem>>, vector<1x16x1xf32>
    %28 = vector.shape_cast %27 : vector<1x16x1xf32> to vector<16x1xf32>
    %29 = vector.broadcast %28 : vector<16x1xf32> to vector<16x128xf32>
    %30 = arith.addf %26, %29 : vector<16x128xf32>
    %31 = math.tanh %30 : vector<16x128xf32>
    %c2 = arith.constant 2 : index
    %c0_17 = arith.constant 0 : index
    %c0_18 = arith.constant 0 : index
    %32 = vector.load %arg4[%c2, %c0_17, %c0_18] : memref<7x16x16xf32, #tpu.memory_space<vmem>>, vector<1x16x16xf32>
    %33 = vector.shape_cast %32 : vector<1x16x16xf32> to vector<16x16xf32>
    %cst_19 = arith.constant dense<0.000000e+00> : vector<16x128xf32>
    %34 = tpu.matmul %33, %31, %cst_19 {dimension_numbers = #tpu.dot_dimension_numbers<[1], [0], [0], [1], [0, 0, 1, 1], [], []>} : vector<16x16xf32>, vector<16x128xf32>, vector<16x128xf32> -> vector<16x128xf32>
    %c2_20 = arith.constant 2 : index
    %c0_21 = arith.constant 0 : index
    %c0_22 = arith.constant 0 : index
    %35 = vector.load %arg5[%c2_20, %c0_21, %c0_22] : memref<7x16x1xf32, #tpu.memory_space<vmem>>, vector<1x16x1xf32>
    %36 = vector.shape_cast %35 : vector<1x16x1xf32> to vector<16x1xf32>
    %37 = vector.broadcast %36 : vector<16x1xf32> to vector<16x128xf32>
    %38 = arith.addf %34, %37 : vector<16x128xf32>
    %39 = math.tanh %38 : vector<16x128xf32>
    %c3 = arith.constant 3 : index
    %c0_23 = arith.constant 0 : index
    %c0_24 = arith.constant 0 : index
    %40 = vector.load %arg4[%c3, %c0_23, %c0_24] : memref<7x16x16xf32, #tpu.memory_space<vmem>>, vector<1x16x16xf32>
    %41 = vector.shape_cast %40 : vector<1x16x16xf32> to vector<16x16xf32>
    %cst_25 = arith.constant dense<0.000000e+00> : vector<16x128xf32>
    %42 = tpu.matmul %41, %39, %cst_25 {dimension_numbers = #tpu.dot_dimension_numbers<[1], [0], [0], [1], [0, 0, 1, 1], [], []>} : vector<16x16xf32>, vector<16x128xf32>, vector<16x128xf32> -> vector<16x128xf32>
    %c3_26 = arith.constant 3 : index
    %c0_27 = arith.constant 0 : index
    %c0_28 = arith.constant 0 : index
    %43 = vector.load %arg5[%c3_26, %c0_27, %c0_28] : memref<7x16x1xf32, #tpu.memory_space<vmem>>, vector<1x16x1xf32>
    %44 = vector.shape_cast %43 : vector<1x16x1xf32> to vector<16x1xf32>
    %45 = vector.broadcast %44 : vector<16x1xf32> to vector<16x128xf32>
    %46 = arith.addf %42, %45 : vector<16x128xf32>
    %47 = math.tanh %46 : vector<16x128xf32>
    %c4 = arith.constant 4 : index
    %c0_29 = arith.constant 0 : index
    %c0_30 = arith.constant 0 : index
    %48 = vector.load %arg4[%c4, %c0_29, %c0_30] : memref<7x16x16xf32, #tpu.memory_space<vmem>>, vector<1x16x16xf32>
    %49 = vector.shape_cast %48 : vector<1x16x16xf32> to vector<16x16xf32>
    %cst_31 = arith.constant dense<0.000000e+00> : vector<16x128xf32>
    %50 = tpu.matmul %49, %47, %cst_31 {dimension_numbers = #tpu.dot_dimension_numbers<[1], [0], [0], [1], [0, 0, 1, 1], [], []>} : vector<16x16xf32>, vector<16x128xf32>, vector<16x128xf32> -> vector<16x128xf32>
    %c4_32 = arith.constant 4 : index
    %c0_33 = arith.constant 0 : index
    %c0_34 = arith.constant 0 : index
    %51 = vector.load %arg5[%c4_32, %c0_33, %c0_34] : memref<7x16x1xf32, #tpu.memory_space<vmem>>, vector<1x16x1xf32>
    %52 = vector.shape_cast %51 : vector<1x16x1xf32> to vector<16x1xf32>
    %53 = vector.broadcast %52 : vector<16x1xf32> to vector<16x128xf32>
    %54 = arith.addf %50, %53 : vector<16x128xf32>
    %55 = math.tanh %54 : vector<16x128xf32>
    %c5 = arith.constant 5 : index
    %c0_35 = arith.constant 0 : index
    %c0_36 = arith.constant 0 : index
    %56 = vector.load %arg4[%c5, %c0_35, %c0_36] : memref<7x16x16xf32, #tpu.memory_space<vmem>>, vector<1x16x16xf32>
    %57 = vector.shape_cast %56 : vector<1x16x16xf32> to vector<16x16xf32>
    %cst_37 = arith.constant dense<0.000000e+00> : vector<16x128xf32>
    %58 = tpu.matmul %57, %55, %cst_37 {dimension_numbers = #tpu.dot_dimension_numbers<[1], [0], [0], [1], [0, 0, 1, 1], [], []>} : vector<16x16xf32>, vector<16x128xf32>, vector<16x128xf32> -> vector<16x128xf32>
    %c5_38 = arith.constant 5 : index
    %c0_39 = arith.constant 0 : index
    %c0_40 = arith.constant 0 : index
    %59 = vector.load %arg5[%c5_38, %c0_39, %c0_40] : memref<7x16x1xf32, #tpu.memory_space<vmem>>, vector<1x16x1xf32>
    %60 = vector.shape_cast %59 : vector<1x16x1xf32> to vector<16x1xf32>
    %61 = vector.broadcast %60 : vector<16x1xf32> to vector<16x128xf32>
    %62 = arith.addf %58, %61 : vector<16x128xf32>
    %63 = math.tanh %62 : vector<16x128xf32>
    %c6 = arith.constant 6 : index
    %c0_41 = arith.constant 0 : index
    %c0_42 = arith.constant 0 : index
    %64 = vector.load %arg4[%c6, %c0_41, %c0_42] : memref<7x16x16xf32, #tpu.memory_space<vmem>>, vector<1x16x16xf32>
    %65 = vector.shape_cast %64 : vector<1x16x16xf32> to vector<16x16xf32>
    %cst_43 = arith.constant dense<0.000000e+00> : vector<16x128xf32>
    %66 = tpu.matmul %65, %63, %cst_43 {dimension_numbers = #tpu.dot_dimension_numbers<[1], [0], [0], [1], [0, 0, 1, 1], [], []>} : vector<16x16xf32>, vector<16x128xf32>, vector<16x128xf32> -> vector<16x128xf32>
    %c6_44 = arith.constant 6 : index
    %c0_45 = arith.constant 0 : index
    %c0_46 = arith.constant 0 : index
    %67 = vector.load %arg5[%c6_44, %c0_45, %c0_46] : memref<7x16x1xf32, #tpu.memory_space<vmem>>, vector<1x16x1xf32>
    %68 = vector.shape_cast %67 : vector<1x16x1xf32> to vector<16x1xf32>
    %69 = vector.broadcast %68 : vector<16x1xf32> to vector<16x128xf32>
    %70 = arith.addf %66, %69 : vector<16x128xf32>
    %71 = math.tanh %70 : vector<16x128xf32>
    %c0_47 = arith.constant 0 : index
    %c0_48 = arith.constant 0 : index
    %72 = vector.load %arg6[%c0_47, %c0_48] : memref<1x16xf32, #tpu.memory_space<vmem>>, vector<1x16xf32>
    %cst_49 = arith.constant dense<0.000000e+00> : vector<1x128xf32>
    %73 = tpu.matmul %72, %71, %cst_49 {dimension_numbers = #tpu.dot_dimension_numbers<[1], [0], [0], [1], [0, 0, 1, 1], [], []>} : vector<1x16xf32>, vector<16x128xf32>, vector<1x128xf32> -> vector<1x128xf32>
    %c0_50 = arith.constant 0 : index
    %c0_51 = arith.constant 0 : index
    %74 = vector.load %arg7[%c0_50, %c0_51] : memref<1x1xf32, #tpu.memory_space<vmem>>, vector<1x1xf32>
    %75 = vector.broadcast %74 : vector<1x1xf32> to vector<1x128xf32>
    %76 = arith.addf %73, %75 : vector<1x128xf32>
    %c0_52 = arith.constant 0 : index
    %c0_53 = arith.constant 0 : index
    %77 = vector.load %arg8[%c0_52, %c0_53] : memref<1x128xf32, #tpu.memory_space<vmem>>, vector<1x128xf32>
    tpu.vector_store %arg8[%c0_52, %c0_53], %76 {strides = array<i32>} : memref<1x128xf32, #tpu.memory_space<vmem>>, vector<1x128xf32>,
    return
  }
  func.func @transform_0(%arg0: i32) -> (i32, i32) {
    %c0_i32 = arith.constant 0 : i32
    %c0_i32_0 = arith.constant 0 : i32
    return %c0_i32, %arg0 : i32, i32
  }
  func.func @transform_1(%arg0: i32) -> (i32, i32) {
    %c0_i32 = arith.constant 0 : i32
    %c0_i32_0 = arith.constant 0 : i32
    %c0_i32_1 = arith.constant 0 : i32
    return %c0_i32, %c0_i32_0 : i32, i32
  }
  func.func @transform_2(%arg0: i32) -> (i32, i32) {
    %c0_i32 = arith.constant 0 : i32
    %c0_i32_0 = arith.constant 0 : i32
    %c0_i32_1 = arith.constant 0 : i32
    return %c0_i32, %c0_i32_0 : i32, i32
  }
  func.func @transform_3(%arg0: i32) -> (i32, i32, i32) {
    %c0_i32 = arith.constant 0 : i32
    %c0_i32_0 = arith.constant 0 : i32
    %c0_i32_1 = arith.constant 0 : i32
    %c0_i32_2 = arith.constant 0 : i32
    return %c0_i32, %c0_i32_0, %c0_i32_1 : i32, i32, i32
  }
  func.func @transform_4(%arg0: i32) -> (i32, i32, i32) {
    %c0_i32 = arith.constant 0 : i32
    %c0_i32_0 = arith.constant 0 : i32
    %c0_i32_1 = arith.constant 0 : i32
    %c0_i32_2 = arith.constant 0 : i32
    return %c0_i32, %c0_i32_0, %c0_i32_1 : i32, i32, i32
  }
  func.func @transform_5(%arg0: i32) -> (i32, i32) {
    %c0_i32 = arith.constant 0 : i32
    %c0_i32_0 = arith.constant 0 : i32
    %c0_i32_1 = arith.constant 0 : i32
    return %c0_i32, %c0_i32_0 : i32, i32
  }
  func.func @transform_6(%arg0: i32) -> (i32, i32) {
    %c0_i32 = arith.constant 0 : i32
    %c0_i32_0 = arith.constant 0 : i32
    %c0_i32_1 = arith.constant 0 : i32
    return %c0_i32, %c0_i32_0 : i32, i32
  }
  func.func @transform_7(%arg0: i32) -> (i32, i32) {
    %c0_i32 = arith.constant 0 : i32
    %c0_i32_0 = arith.constant 0 : i32
    return %c0_i32, %arg0 : i32, i32
  }
}

</mosaic_0001>

<llo_original>
// kernel: tpu_custom_call.1
$region0: #{tpu_custom_call.1}
  #allocation0 [shape = 'u32[]', space=smem, size = 0x4, offset = 0x4, fixed_abs, tag = 'smem constant byte address 0x4 - core index']
  #allocation1 [shape = 'u32[144,128]{1,0:T(1,128)}', space=vmem, size = 0x12000, scoped, tag = 'internal scratch']
  #allocation2 [shape = 'f32[1,1]{1,0:T(1,128)S(1)}', space=vmem, size = 0x200, scoped, tag = 'scoped memory for tpu_custom_call.1']
  %s0 = inlined_call_operand.vmem [shape: f32[2,128], index: 0, kind: input, shape index: {}]
  %s1 = inlined_call_operand.vmem [shape: f32[16,2], index: 1, kind: input, shape index: {}]
  %s2 = inlined_call_operand.vmem [shape: f32[16,1], index: 2, kind: input, shape index: {}]
  %s3 = inlined_call_operand.vmem [shape: f32[7,16,16], index: 3, kind: input, shape index: {}]
  %s4 = inlined_call_operand.vmem [shape: f32[7,16,1], index: 4, kind: input, shape index: {}]
  %s5 = inlined_call_operand.vmem [shape: f32[1,16], index: 5, kind: input, shape index: {}]
  %s6 = inlined_call_operand.<no memory space> [shape: f32[1,1], index: 6, kind: input, shape index: {}]
  %s7 = inlined_call_operand.hbm [shape: f32[1,128], index: 7, kind: output, shape index: {}]
  %s8 = sld [smem:[#allocation0]]
  $region38: #{tpu_custom_call.1} parent=0
    _
  %s10 = ssub.s32 1, %s8
  %s11 = scalar_select 0, %s10, %s8
  %v12 = vstv %s6
  %13 = vst [vmem:[#allocation2] sm:$0x1] %v12
  $region1: #{tpu_custom_call.1} parent=0
    #allocation3 [shape = 'u8[512]{0}', space=vmem, size = 0x400, scoped, tag = 'output window, operand 0, single buffered']
    #allocation4 [shape = 's32[1]{0}', space=sflag, size = 0x4, scoped, tag = 'scoped memory for tpu_custom_call.1']
    %14 = vsyncpa [#allocation4], 0
    // Predicated region
    $region2: #{tpu_custom_call.1} parent=1 // pred_check
      _
    $region3: #{tpu_custom_call.1} parent=1 // pred_check_branch
      %16 = sbr.rel (0) target = $region5
    $region4: #{tpu_custom_call.1} parent=1 // pred_region
      _
    $region5: #{tpu_custom_call.1} parent=1 // pred_fallthru
      _
    // Predicated region
    $region6: #{tpu_custom_call.1} parent=1 // pred_check
      _
    $region7: #{tpu_custom_call.1} parent=1 // pred_check_branch
      %18 = sbr.rel (0) target = $region9
    $region8: #{tpu_custom_call.1} parent=1 // pred_region
      _
    $region9: #{tpu_custom_call.1} parent=1 // pred_fallthru
      _
    // Predicated region
    $region10: #{tpu_custom_call.1} parent=1 // pred_check
      _
    $region11: #{tpu_custom_call.1} parent=1 // pred_check_branch
      %20 = sbr.rel (0) target = $region13
    $region12: #{tpu_custom_call.1} parent=1 // pred_region
      _
    $region13: #{tpu_custom_call.1} parent=1 // pred_fallthru
      _
    // Predicated region
    $region14: #{tpu_custom_call.1} parent=1 // pred_check
      _
    $region15: #{tpu_custom_call.1} parent=1 // pred_check_branch
      %22 = sbr.rel (0) target = $region17
    $region16: #{tpu_custom_call.1} parent=1 // pred_region
      _
    $region17: #{tpu_custom_call.1} parent=1 // pred_fallthru
      _
    // Predicated region
    $region18: #{tpu_custom_call.1} parent=1 // pred_check
      _
    $region19: #{tpu_custom_call.1} parent=1 // pred_check_branch
      %24 = sbr.rel (0) target = $region21
    $region20: #{tpu_custom_call.1} parent=1 // pred_region
      _
    $region21: #{tpu_custom_call.1} parent=1 // pred_fallthru
      _
    // Predicated region
    $region22: #{tpu_custom_call.1} parent=1 // pred_check
      _
    $region23: #{tpu_custom_call.1} parent=1 // pred_check_branch
      %26 = sbr.rel (0) target = $region25
    $region24: #{tpu_custom_call.1} parent=1 // pred_region
      _
    $region25: #{tpu_custom_call.1} parent=1 // pred_fallthru
      _
    // Predicated region
    $region26: #{tpu_custom_call.1} parent=1 // pred_check
      _
    $region27: #{tpu_custom_call.1} parent=1 // pred_check_branch
      %28 = sbr.rel (0) target = $region29
    $region28: #{tpu_custom_call.1} parent=1 // pred_region
      _
    $region29: #{tpu_custom_call.1} parent=1 // pred_fallthru
      _
    %v29 = vld [vmem:[%s0] sm:$0x3]
    %v30 = vld [vmem:[%s1] sm:$0xff]
    %v31 = vld [vmem:[%s1 + $0x8] sm:$0xff]
    %33 = vset.pattern.permute.xlu0 0
    %34 = vperm.xlu0 %33, %v30
    %v35 = vpop.permute.xlu0 %34
    %38 = vset.pattern.permute.xlu0 0
    %39 = vperm.xlu0 %38, %v31
    %v40 = vpop.permute.xlu0 %39
    %v42 = vlaneseq
    %v43 = vshrl.u32 %v42, 7
    %v44 = vsub.s32 0, %v43
    %v45 = vrot.slane %v29, %v44
    %v46 = vmul.f32 %v35, %v45
    %v47 = vmul.f32 %v40, %v45
    %48 = vset.pattern.permute.xlu0 1
    %49 = vperm.xlu0 %48, %v30
    %v50 = vpop.permute.xlu0 %49
    %52 = vset.pattern.permute.xlu0 1
    %53 = vperm.xlu0 %52, %v31
    %v54 = vpop.permute.xlu0 %53
    %v56 = vlaneseq
    %v57 = vshrl.u32 %v56, 7
    %v58 = vsub.s32 1, %v57
    %v59 = vrot.slane %v29, %v58
    %v60 = vmul.f32 %v50, %v59
    %v61 = vmul.f32 %v54, %v59
    %v62 = vadd.f32 %v46, %v60
    %v63 = vadd.f32 %v47, %v61
    %v64 = vld [vmem:[%s2] sm:$0xff]
    %v65 = vld [vmem:[%s2 + $0x8] sm:$0xff]
    %67 = vset.pattern.permute.xlu0 0
    %68 = vperm.xlu0 %67, %v64
    %v69 = vpop.permute.xlu0 %68
    %72 = vset.pattern.permute.xlu0 0
    %73 = vperm.xlu0 %72, %v65
    %v74 = vpop.permute.xlu0 %73
    %v76 = vadd.f32 %v62, %v69
    %v77 = vadd.f32 %v63, %v74
    %v78 = vld [vmem:[%s3] sm:$0xff]
    %v79 = vld [vmem:[%s3 + $0x8] sm:$0xff]
    %v80 = vld [vmem:[%s4] sm:$0xff]
    %v81 = vld [vmem:[%s4 + $0x8] sm:$0xff]
    %83 = vset.pattern.permute.xlu0 0
    %84 = vperm.xlu0 %83, %v80
    %v85 = vpop.permute.xlu0 %84
    %88 = vset.pattern.permute.xlu0 0
    %89 = vperm.xlu0 %88, %v81
    %v90 = vpop.permute.xlu0 %89
    %vm92 = vcmask 130048
    %v94 = vsel %vm92, %v78, 0
    %v97 = vsel %vm92, %v79, 0
    %99 = vmatprep.subr.mxu0 0.0
    %100 = vmatpush1.msra.mxu0 0.0
    %101 = vmatprep.subr.mxu0 0.0
    %102 = vmatpush1.msra.mxu0 0.0
    %103 = vmatprep.subr.mxu0 0.0
    %104 = vmatpush1.msra.mxu0 0.0
    %105 = vmatprep.subr.mxu0 0.0
    %106 = vmatpush1.msra.mxu0 0.0
    %107 = vmatprep.subr.mxu0 0.0
    %108 = vmatpush1.msra.mxu0 0.0
    %109 = vmatprep.subr.mxu0 0.0
    %110 = vmatpush1.msra.mxu0 0.0
    %111 = vmatprep.subr.mxu0 0.0
    %112 = vmatpush1.msra.mxu0 0.0
    %113 = vmatprep.subr.mxu0 0.0
    %114 = vmatpush1.msra.mxu0 0.0
    %115 = vmatprep.subr.mxu0 0.0
    %116 = vmatpush1.msra.mxu0 0.0
    %117 = vmatprep.subr.mxu0 0.0
    %118 = vmatpush1.msra.mxu0 0.0
    %119 = vmatprep.subr.mxu0 0.0
    %120 = vmatpush1.msra.mxu0 0.0
    %121 = vmatprep.subr.mxu0 0.0
    %122 = vmatpush1.msra.mxu0 0.0
    %123 = vmatprep.subr.mxu0 0.0
    %124 = vmatpush1.msra.mxu0 0.0
    %125 = vmatprep.subr.mxu0 0.0
    %126 = vmatpush1.msra.mxu0 0.0
    %127 = vmatprep.subr.mxu0 0.0
    %128 = vmatpush1.msra.mxu0 %v77
    %129 = vmatprep.subr.mxu0 0.0
    %130 = vmatpush1.msra.mxu0 %v76
    %131 = vmatprep.subr.mxu0 0.0
    %132 = vmatpush2.msra.mxu0 0.0
    %133 = vmatprep.subr.mxu0 0.0
    %134 = vmatpush2.msra.mxu0 0.0
    %135 = vmatprep.subr.mxu0 0.0
    %136 = vmatpush2.msra.mxu0 0.0
    %137 = vmatprep.subr.mxu0 0.0
    %138 = vmatpush2.msra.mxu0 0.0
    %139 = vmatprep.subr.mxu0 0.0
    %140 = vmatpush2.msra.mxu0 0.0
    %141 = vmatprep.subr.mxu0 0.0
    %142 = vmatpush2.msra.mxu0 0.0
    %143 = vmatprep.subr.mxu0 0.0
    %144 = vmatpush2.msra.mxu0 0.0
    %145 = vmatprep.subr.mxu0 0.0
    %146 = vmatpush2.msra.mxu0 0.0
    %147 = vmatprep.subr.mxu0 0.0
    %148 = vmatpush2.msra.mxu0 0.0
    %149 = vmatprep.subr.mxu0 0.0
    %150 = vmatpush2.msra.mxu0 0.0
    %151 = vmatprep.subr.mxu0 0.0
    %152 = vmatpush2.msra.mxu0 0.0
    %153 = vmatprep.subr.mxu0 0.0
    %154 = vmatpush2.msra.mxu0 0.0
    %155 = vmatprep.subr.mxu0 0.0
    %156 = vmatpush2.msra.mxu0 0.0
    %157 = vmatprep.subr.mxu0 0.0
    %158 = vmatpush2.msra.mxu0 0.0
    %159 = vmatprep.subr.mxu0 0.0
    %160 = vmatpush2.msra.mxu0 0.0
    %161 = vmatprep.subr.mxu0 0.0
    %162 = vmatpush2.msra.mxu0 0.0
    %163 = vmatprep.mubr.f32.mxu0 0.0
    %164 = vmatmul.mubr.f32.gmra.mxu0 %v94
    %v165 = vpop.f32.mrf.mxu0
    %v166 = vadd.f32 %v85, %v165
    %v167 = vpop.f32.mrf.mxu0
    %168 = vmatprep.mubr.f32.mxu0 0.0
    %169 = vmatmul.mubr.f32.gmra.mxu0 %v97
    %v170 = vpop.f32.mrf.mxu0
    %v171 = vadd.f32 %v90, %v170
    %v172 = vpop.f32.mrf.mxu0
    %173 = vdwg.mxu0
    %v174 = vtanh.pop %v166
    %v175 = vtanh.pop %v171
    %s176 = scalar_lea.vmem %s3, 16
    %v177 = vld [vmem:[%s176] sm:$0xff]
    %v178 = vld [vmem:[%s176 + $0x8] sm:$0xff]
    %s179 = scalar_lea.vmem %s4, 16
    %v180 = vld [vmem:[%s179] sm:$0xff]
    %v181 = vld [vmem:[%s179 + $0x8] sm:$0xff]
    %183 = vset.pattern.permute.xlu0 0
    %184 = vperm.xlu0 %183, %v180
    %v185 = vpop.permute.xlu0 %184
    %188 = vset.pattern.permute.xlu0 0
    %189 = vperm.xlu0 %188, %v181
    %v190 = vpop.permute.xlu0 %189
    %v193 = vsel %vm92, %v177, 0
    %v196 = vsel %vm92, %v178, 0
    %198 = vmatprep.subr.mxu0 0.0
    %199 = vmatpush1.msra.mxu0 0.0
    %200 = vmatprep.subr.mxu0 0.0
    %201 = vmatpush1.msra.mxu0 0.0
    %202 = vmatprep.subr.mxu0 0.0
    %203 = vmatpush1.msra.mxu0 0.0
    %204 = vmatprep.subr.mxu0 0.0
    %205 = vmatpush1.msra.mxu0 0.0
    %206 = vmatprep.subr.mxu0 0.0
    %207 = vmatpush1.msra.mxu0 0.0
    %208 = vmatprep.subr.mxu0 0.0
    %209 = vmatpush1.msra.mxu0 0.0
    %210 = vmatprep.subr.mxu0 0.0
    %211 = vmatpush1.msra.mxu0 0.0
    %212 = vmatprep.subr.mxu0 0.0
    %213 = vmatpush1.msra.mxu0 0.0
    %214 = vmatprep.subr.mxu0 0.0
    %215 = vmatpush1.msra.mxu0 0.0
    %216 = vmatprep.subr.mxu0 0.0
    %217 = vmatpush1.msra.mxu0 0.0
    %218 = vmatprep.subr.mxu0 0.0
    %219 = vmatpush1.msra.mxu0 0.0
    %220 = vmatprep.subr.mxu0 0.0
    %221 = vmatpush1.msra.mxu0 0.0
    %222 = vmatprep.subr.mxu0 0.0
    %223 = vmatpush1.msra.mxu0 0.0
    %224 = vmatprep.subr.mxu0 0.0
    %225 = vmatpush1.msra.mxu0 0.0
    %226 = vmatprep.subr.mxu0 0.0
    %227 = vmatpush1.msra.mxu0 %v175
    %228 = vmatprep.subr.mxu0 0.0
    %229 = vmatpush1.msra.mxu0 %v174
    %230 = vmatprep.subr.mxu0 0.0
    %231 = vmatpush2.msra.mxu0 0.0
    %232 = vmatprep.subr.mxu0 0.0
    %233 = vmatpush2.msra.mxu0 0.0
    %234 = vmatprep.subr.mxu0 0.0
    %235 = vmatpush2.msra.mxu0 0.0
    %236 = vmatprep.subr.mxu0 0.0
    %237 = vmatpush2.msra.mxu0 0.0
    %238 = vmatprep.subr.mxu0 0.0
    %239 = vmatpush2.msra.mxu0 0.0
    %240 = vmatprep.subr.mxu0 0.0
    %241 = vmatpush2.msra.mxu0 0.0
    %242 = vmatprep.subr.mxu0 0.0
    %243 = vmatpush2.msra.mxu0 0.0
    %244 = vmatprep.subr.mxu0 0.0
    %245 = vmatpush2.msra.mxu0 0.0
    %246 = vmatprep.subr.mxu0 0.0
    %247 = vmatpush2.msra.mxu0 0.0
    %248 = vmatprep.subr.mxu0 0.0
    %249 = vmatpush2.msra.mxu0 0.0
    %250 = vmatprep.subr.mxu0 0.0
    %251 = vmatpush2.msra.mxu0 0.0
    %252 = vmatprep.subr.mxu0 0.0
    %253 = vmatpush2.msra.mxu0 0.0
    %254 = vmatprep.subr.mxu0 0.0
    %255 = vmatpush2.msra.mxu0 0.0
    %256 = vmatprep.subr.mxu0 0.0
    %257 = vmatpush2.msra.mxu0 0.0
    %258 = vmatprep.subr.mxu0 0.0
    %259 = vmatpush2.msra.mxu0 0.0
    %260 = vmatprep.subr.mxu0 0.0
    %261 = vmatpush2.msra.mxu0 0.0
    %262 = vmatprep.mubr.f32.mxu0 0.0
    %263 = vmatmul.mubr.f32.gmra.mxu0 %v193
    %v264 = vpop.f32.mrf.mxu0
    %v265 = vadd.f32 %v185, %v264
    %v266 = vpop.f32.mrf.mxu0
    %267 = vmatprep.mubr.f32.mxu0 0.0
    %268 = vmatmul.mubr.f32.gmra.mxu0 %v196
    %v269 = vpop.f32.mrf.mxu0
    %v270 = vadd.f32 %v190, %v269
    %v271 = vpop.f32.mrf.mxu0
    %272 = vdwg.mxu0
    %v273 = vtanh.pop %v265
    %v274 = vtanh.pop %v270
    %s275 = scalar_lea.vmem %s3, 32
    %v276 = vld [vmem:[%s275] sm:$0xff]
    %v277 = vld [vmem:[%s275 + $0x8] sm:$0xff]
    %s278 = scalar_lea.vmem %s4, 32
    %v279 = vld [vmem:[%s278] sm:$0xff]
    %v280 = vld [vmem:[%s278 + $0x8] sm:$0xff]
    %282 = vset.pattern.permute.xlu0 0
    %283 = vperm.xlu0 %282, %v279
    %v284 = vpop.permute.xlu0 %283
    %287 = vset.pattern.permute.xlu0 0
    %288 = vperm.xlu0 %287, %v280
    %v289 = vpop.permute.xlu0 %288
    %v292 = vsel %vm92, %v276, 0
    %v295 = vsel %vm92, %v277, 0
    %297 = vmatprep.subr.mxu0 0.0
    %298 = vmatpush1.msra.mxu0 0.0
    %299 = vmatprep.subr.mxu0 0.0
    %300 = vmatpush1.msra.mxu0 0.0
    %301 = vmatprep.subr.mxu0 0.0
    %302 = vmatpush1.msra.mxu0 0.0
    %303 = vmatprep.subr.mxu0 0.0
    %304 = vmatpush1.msra.mxu0 0.0
    %305 = vmatprep.subr.mxu0 0.0
    %306 = vmatpush1.msra.mxu0 0.0
    %307 = vmatprep.subr.mxu0 0.0
    %308 = vmatpush1.msra.mxu0 0.0
    %309 = vmatprep.subr.mxu0 0.0
    %310 = vmatpush1.msra.mxu0 0.0
    %311 = vmatprep.subr.mxu0 0.0
    %312 = vmatpush1.msra.mxu0 0.0
    %313 = vmatprep.subr.mxu0 0.0
    %314 = vmatpush1.msra.mxu0 0.0
    %315 = vmatprep.subr.mxu0 0.0
    %316 = vmatpush1.msra.mxu0 0.0
    %317 = vmatprep.subr.mxu0 0.0
    %318 = vmatpush1.msra.mxu0 0.0
    %319 = vmatprep.subr.mxu0 0.0
    %320 = vmatpush1.msra.mxu0 0.0
    %321 = vmatprep.subr.mxu0 0.0
    %322 = vmatpush1.msra.mxu0 0.0
    %323 = vmatprep.subr.mxu0 0.0
    %324 = vmatpush1.msra.mxu0 0.0
    %325 = vmatprep.subr.mxu0 0.0
    %326 = vmatpush1.msra.mxu0 %v274
    %327 = vmatprep.subr.mxu0 0.0
    %328 = vmatpush1.msra.mxu0 %v273
    %329 = vmatprep.subr.mxu0 0.0
    %330 = vmatpush2.msra.mxu0 0.0
    %331 = vmatprep.subr.mxu0 0.0
    %332 = vmatpush2.msra.mxu0 0.0
    %333 = vmatprep.subr.mxu0 0.0
    %334 = vmatpush2.msra.mxu0 0.0
    %335 = vmatprep.subr.mxu0 0.0
    %336 = vmatpush2.msra.mxu0 0.0
    %337 = vmatprep.subr.mxu0 0.0
    %338 = vmatpush2.msra.mxu0 0.0
    %339 = vmatprep.subr.mxu0 0.0
    %340 = vmatpush2.msra.mxu0 0.0
    %341 = vmatprep.subr.mxu0 0.0
    %342 = vmatpush2.msra.mxu0 0.0
    %343 = vmatprep.subr.mxu0 0.0
    %344 = vmatpush2.msra.mxu0 0.0
    %345 = vmatprep.subr.mxu0 0.0
    %346 = vmatpush2.msra.mxu0 0.0
    %347 = vmatprep.subr.mxu0 0.0
    %348 = vmatpush2.msra.mxu0 0.0
    %349 = vmatprep.subr.mxu0 0.0
    %350 = vmatpush2.msra.mxu0 0.0
    %351 = vmatprep.subr.mxu0 0.0
    %352 = vmatpush2.msra.mxu0 0.0
    %353 = vmatprep.subr.mxu0 0.0
    %354 = vmatpush2.msra.mxu0 0.0
    %355 = vmatprep.subr.mxu0 0.0
    %356 = vmatpush2.msra.mxu0 0.0
    %357 = vmatprep.subr.mxu0 0.0
    %358 = vmatpush2.msra.mxu0 0.0
    %359 = vmatprep.subr.mxu0 0.0
    %360 = vmatpush2.msra.mxu0 0.0
    %361 = vmatprep.mubr.f32.mxu0 0.0
    %362 = vmatmul.mubr.f32.gmra.mxu0 %v292
    %v363 = vpop.f32.mrf.mxu0
    %v364 = vadd.f32 %v284, %v363
    %v365 = vpop.f32.mrf.mxu0
    %366 = vmatprep.mubr.f32.mxu0 0.0
    %367 = vmatmul.mubr.f32.gmra.mxu0 %v295
    %v368 = vpop.f32.mrf.mxu0
    %v369 = vadd.f32 %v289, %v368
    %v370 = vpop.f32.mrf.mxu0
    %371 = vdwg.mxu0
    %v372 = vtanh.pop %v364
    %v373 = vtanh.pop %v369
    %s374 = scalar_lea.vmem %s3, 48
    %v375 = vld [vmem:[%s374] sm:$0xff]
    %v376 = vld [vmem:[%s374 + $0x8] sm:$0xff]
    %s377 = scalar_lea.vmem %s4, 48
    %v378 = vld [vmem:[%s377] sm:$0xff]
    %v379 = vld [vmem:[%s377 + $0x8] sm:$0xff]
    %381 = vset.pattern.permute.xlu0 0
    %382 = vperm.xlu0 %381, %v378
    %v383 = vpop.permute.xlu0 %382
    %386 = vset.pattern.permute.xlu0 0
    %387 = vperm.xlu0 %386, %v379
    %v388 = vpop.permute.xlu0 %387
    %v391 = vsel %vm92, %v375, 0
    %v394 = vsel %vm92, %v376, 0
    %396 = vmatprep.subr.mxu0 0.0
    %397 = vmatpush1.msra.mxu0 0.0
    %398 = vmatprep.subr.mxu0 0.0
    %399 = vmatpush1.msra.mxu0 0.0
    %400 = vmatprep.subr.mxu0 0.0
    %401 = vmatpush1.msra.mxu0 0.0
    %402 = vmatprep.subr.mxu0 0.0
    %403 = vmatpush1.msra.mxu0 0.0
    %404 = vmatprep.subr.mxu0 0.0
    %405 = vmatpush1.msra.mxu0 0.0
    %406 = vmatprep.subr.mxu0 0.0
    %407 = vmatpush1.msra.mxu0 0.0
    %408 = vmatprep.subr.mxu0 0.0
    %409 = vmatpush1.msra.mxu0 0.0
    %410 = vmatprep.subr.mxu0 0.0
    %411 = vmatpush1.msra.mxu0 0.0
    %412 = vmatprep.subr.mxu0 0.0
    %413 = vmatpush1.msra.mxu0 0.0
    %414 = vmatprep.subr.mxu0 0.0
    %415 = vmatpush1.msra.mxu0 0.0
    %416 = vmatprep.subr.mxu0 0.0
    %417 = vmatpush1.msra.mxu0 0.0
    %418 = vmatprep.subr.mxu0 0.0
    %419 = vmatpush1.msra.mxu0 0.0
    %420 = vmatprep.subr.mxu0 0.0
    %421 = vmatpush1.msra.mxu0 0.0
    %422 = vmatprep.subr.mxu0 0.0
    %423 = vmatpush1.msra.mxu0 0.0
    %424 = vmatprep.subr.mxu0 0.0
    %425 = vmatpush1.msra.mxu0 %v373
    %426 = vmatprep.subr.mxu0 0.0
    %427 = vmatpush1.msra.mxu0 %v372
    %428 = vmatprep.subr.mxu0 0.0
    %429 = vmatpush2.msra.mxu0 0.0
    %430 = vmatprep.subr.mxu0 0.0
    %431 = vmatpush2.msra.mxu0 0.0
    %432 = vmatprep.subr.mxu0 0.0
    %433 = vmatpush2.msra.mxu0 0.0
    %434 = vmatprep.subr.mxu0 0.0
    %435 = vmatpush2.msra.mxu0 0.0
    %436 = vmatprep.subr.mxu0 0.0
    %437 = vmatpush2.msra.mxu0 0.0
    %438 = vmatprep.subr.mxu0 0.0
    %439 = vmatpush2.msra.mxu0 0.0
    %440 = vmatprep.subr.mxu0 0.0
    %441 = vmatpush2.msra.mxu0 0.0
    %442 = vmatprep.subr.mxu0 0.0
    %443 = vmatpush2.msra.mxu0 0.0
    %444 = vmatprep.subr.mxu0 0.0
    %445 = vmatpush2.msra.mxu0 0.0
    %446 = vmatprep.subr.mxu0 0.0
    %447 = vmatpush2.msra.mxu0 0.0
    %448 = vmatprep.subr.mxu0 0.0
    %449 = vmatpush2.msra.mxu0 0.0
    %450 = vmatprep.subr.mxu0 0.0
    %451 = vmatpush2.msra.mxu0 0.0
    %452 = vmatprep.subr.mxu0 0.0
    %453 = vmatpush2.msra.mxu0 0.0
    %454 = vmatprep.subr.mxu0 0.0
    %455 = vmatpush2.msra.mxu0 0.0
    %456 = vmatprep.subr.mxu0 0.0
    %457 = vmatpush2.msra.mxu0 0.0
    %458 = vmatprep.subr.mxu0 0.0
    %459 = vmatpush2.msra.mxu0 0.0
    %460 = vmatprep.mubr.f32.mxu0 0.0
    %461 = vmatmul.mubr.f32.gmra.mxu0 %v391
    %v462 = vpop.f32.mrf.mxu0
    %v463 = vadd.f32 %v383, %v462
    %v464 = vpop.f32.mrf.mxu0
    %465 = vmatprep.mubr.f32.mxu0 0.0
    %466 = vmatmul.mubr.f32.gmra.mxu0 %v394
    %v467 = vpop.f32.mrf.mxu0
    %v468 = vadd.f32 %v388, %v467
    %v469 = vpop.f32.mrf.mxu0
    %470 = vdwg.mxu0
    %v471 = vtanh.pop %v463
    %v472 = vtanh.pop %v468
    %s473 = scalar_lea.vmem %s3, 64
    %v474 = vld [vmem:[%s473] sm:$0xff]
    %v475 = vld [vmem:[%s473 + $0x8] sm:$0xff]
    %s476 = scalar_lea.vmem %s4, 64
    %v477 = vld [vmem:[%s476] sm:$0xff]
    %v478 = vld [vmem:[%s476 + $0x8] sm:$0xff]
    %480 = vset.pattern.permute.xlu0 0
    %481 = vperm.xlu0 %480, %v477
    %v482 = vpop.permute.xlu0 %481
    %485 = vset.pattern.permute.xlu0 0
    %486 = vperm.xlu0 %485, %v478
    %v487 = vpop.permute.xlu0 %486
    %v490 = vsel %vm92, %v474, 0
    %v493 = vsel %vm92, %v475, 0
    %495 = vmatprep.subr.mxu0 0.0
    %496 = vmatpush1.msra.mxu0 0.0
    %497 = vmatprep.subr.mxu0 0.0
    %498 = vmatpush1.msra.mxu0 0.0
    %499 = vmatprep.subr.mxu0 0.0
    %500 = vmatpush1.msra.mxu0 0.0
    %501 = vmatprep.subr.mxu0 0.0
    %502 = vmatpush1.msra.mxu0 0.0
    %503 = vmatprep.subr.mxu0 0.0
    %504 = vmatpush1.msra.mxu0 0.0
    %505 = vmatprep.subr.mxu0 0.0
    %506 = vmatpush1.msra.mxu0 0.0
    %507 = vmatprep.subr.mxu0 0.0
    %508 = vmatpush1.msra.mxu0 0.0
    %509 = vmatprep.subr.mxu0 0.0
    %510 = vmatpush1.msra.mxu0 0.0
    %511 = vmatprep.subr.mxu0 0.0
    %512 = vmatpush1.msra.mxu0 0.0
    %513 = vmatprep.subr.mxu0 0.0
    %514 = vmatpush1.msra.mxu0 0.0
    %515 = vmatprep.subr.mxu0 0.0
    %516 = vmatpush1.msra.mxu0 0.0
    %517 = vmatprep.subr.mxu0 0.0
    %518 = vmatpush1.msra.mxu0 0.0
    %519 = vmatprep.subr.mxu0 0.0
    %520 = vmatpush1.msra.mxu0 0.0
    %521 = vmatprep.subr.mxu0 0.0
    %522 = vmatpush1.msra.mxu0 0.0
    %523 = vmatprep.subr.mxu0 0.0
    %524 = vmatpush1.msra.mxu0 %v472
    %525 = vmatprep.subr.mxu0 0.0
    %526 = vmatpush1.msra.mxu0 %v471
    %527 = vmatprep.subr.mxu0 0.0
    %528 = vmatpush2.msra.mxu0 0.0
    %529 = vmatprep.subr.mxu0 0.0
    %530 = vmatpush2.msra.mxu0 0.0
    %531 = vmatprep.subr.mxu0 0.0
    %532 = vmatpush2.msra.mxu0 0.0
    %533 = vmatprep.subr.mxu0 0.0
    %534 = vmatpush2.msra.mxu0 0.0
    %535 = vmatprep.subr.mxu0 0.0
    %536 = vmatpush2.msra.mxu0 0.0
    %537 = vmatprep.subr.mxu0 0.0
    %538 = vmatpush2.msra.mxu0 0.0
    %539 = vmatprep.subr.mxu0 0.0
    %540 = vmatpush2.msra.mxu0 0.0
    %541 = vmatprep.subr.mxu0 0.0
    %542 = vmatpush2.msra.mxu0 0.0
    %543 = vmatprep.subr.mxu0 0.0
    %544 = vmatpush2.msra.mxu0 0.0
    %545 = vmatprep.subr.mxu0 0.0
    %546 = vmatpush2.msra.mxu0 0.0
    %547 = vmatprep.subr.mxu0 0.0
    %548 = vmatpush2.msra.mxu0 0.0
    %549 = vmatprep.subr.mxu0 0.0
    %550 = vmatpush2.msra.mxu0 0.0
    %551 = vmatprep.subr.mxu0 0.0
    %552 = vmatpush2.msra.mxu0 0.0
    %553 = vmatprep.subr.mxu0 0.0
    %554 = vmatpush2.msra.mxu0 0.0
    %555 = vmatprep.subr.mxu0 0.0
    %556 = vmatpush2.msra.mxu0 0.0
    %557 = vmatprep.subr.mxu0 0.0
    %558 = vmatpush2.msra.mxu0 0.0
    %559 = vmatprep.mubr.f32.mxu0 0.0
    %560 = vmatmul.mubr.f32.gmra.mxu0 %v490
    %v561 = vpop.f32.mrf.mxu0
    %v562 = vadd.f32 %v482, %v561
    %v563 = vpop.f32.mrf.mxu0
    %564 = vmatprep.mubr.f32.mxu0 0.0
    %565 = vmatmul.mubr.f32.gmra.mxu0 %v493
    %v566 = vpop.f32.mrf.mxu0
    %v567 = vadd.f32 %v487, %v566
    %v568 = vpop.f32.mrf.mxu0
    %569 = vdwg.mxu0
    %v570 = vtanh.pop %v562
    %v571 = vtanh.pop %v567
    %s572 = scalar_lea.vmem %s3, 80
    %v573 = vld [vmem:[%s572] sm:$0xff]
    %v574 = vld [vmem:[%s572 + $0x8] sm:$0xff]
    %s575 = scalar_lea.vmem %s4, 80
    %v576 = vld [vmem:[%s575] sm:$0xff]
    %v577 = vld [vmem:[%s575 + $0x8] sm:$0xff]
    %579 = vset.pattern.permute.xlu0 0
    %580 = vperm.xlu0 %579, %v576
    %v581 = vpop.permute.xlu0 %580
    %584 = vset.pattern.permute.xlu0 0
    %585 = vperm.xlu0 %584, %v577
    %v586 = vpop.permute.xlu0 %585
    %v589 = vsel %vm92, %v573, 0
    %v592 = vsel %vm92, %v574, 0
    %594 = vmatprep.subr.mxu0 0.0
    %595 = vmatpush1.msra.mxu0 0.0
    %596 = vmatprep.subr.mxu0 0.0
    %597 = vmatpush1.msra.mxu0 0.0
    %598 = vmatprep.subr.mxu0 0.0
    %599 = vmatpush1.msra.mxu0 0.0
    %600 = vmatprep.subr.mxu0 0.0
    %601 = vmatpush1.msra.mxu0 0.0
    %602 = vmatprep.subr.mxu0 0.0
    %603 = vmatpush1.msra.mxu0 0.0
    %604 = vmatprep.subr.mxu0 0.0
    %605 = vmatpush1.msra.mxu0 0.0
    %606 = vmatprep.subr.mxu0 0.0
    %607 = vmatpush1.msra.mxu0 0.0
    %608 = vmatprep.subr.mxu0 0.0
    %609 = vmatpush1.msra.mxu0 0.0
    %610 = vmatprep.subr.mxu0 0.0
    %611 = vmatpush1.msra.mxu0 0.0
    %612 = vmatprep.subr.mxu0 0.0
    %613 = vmatpush1.msra.mxu0 0.0
    %614 = vmatprep.subr.mxu0 0.0
    %615 = vmatpush1.msra.mxu0 0.0
    %616 = vmatprep.subr.mxu0 0.0
    %617 = vmatpush1.msra.mxu0 0.0
    %618 = vmatprep.subr.mxu0 0.0
    %619 = vmatpush1.msra.mxu0 0.0
    %620 = vmatprep.subr.mxu0 0.0
    %621 = vmatpush1.msra.mxu0 0.0
    %622 = vmatprep.subr.mxu0 0.0
    %623 = vmatpush1.msra.mxu0 %v571
    %624 = vmatprep.subr.mxu0 0.0
    %625 = vmatpush1.msra.mxu0 %v570
    %626 = vmatprep.subr.mxu0 0.0
    %627 = vmatpush2.msra.mxu0 0.0
    %628 = vmatprep.subr.mxu0 0.0
    %629 = vmatpush2.msra.mxu0 0.0
    %630 = vmatprep.subr.mxu0 0.0
    %631 = vmatpush2.msra.mxu0 0.0
    %632 = vmatprep.subr.mxu0 0.0
    %633 = vmatpush2.msra.mxu0 0.0
    %634 = vmatprep.subr.mxu0 0.0
    %635 = vmatpush2.msra.mxu0 0.0
    %636 = vmatprep.subr.mxu0 0.0
    %637 = vmatpush2.msra.mxu0 0.0
    %638 = vmatprep.subr.mxu0 0.0
    %639 = vmatpush2.msra.mxu0 0.0
    %640 = vmatprep.subr.mxu0 0.0
    %641 = vmatpush2.msra.mxu0 0.0
    %642 = vmatprep.subr.mxu0 0.0
    %643 = vmatpush2.msra.mxu0 0.0
    %644 = vmatprep.subr.mxu0 0.0
    %645 = vmatpush2.msra.mxu0 0.0
    %646 = vmatprep.subr.mxu0 0.0
    %647 = vmatpush2.msra.mxu0 0.0
    %648 = vmatprep.subr.mxu0 0.0
    %649 = vmatpush2.msra.mxu0 0.0
    %650 = vmatprep.subr.mxu0 0.0
    %651 = vmatpush2.msra.mxu0 0.0
    %652 = vmatprep.subr.mxu0 0.0
    %653 = vmatpush2.msra.mxu0 0.0
    %654 = vmatprep.subr.mxu0 0.0
    %655 = vmatpush2.msra.mxu0 0.0
    %656 = vmatprep.subr.mxu0 0.0
    %657 = vmatpush2.msra.mxu0 0.0
    %658 = vmatprep.mubr.f32.mxu0 0.0
    %659 = vmatmul.mubr.f32.gmra.mxu0 %v589
    %v660 = vpop.f32.mrf.mxu0
    %v661 = vadd.f32 %v581, %v660
    %v662 = vpop.f32.mrf.mxu0
    %663 = vmatprep.mubr.f32.mxu0 0.0
    %664 = vmatmul.mubr.f32.gmra.mxu0 %v592
    %v665 = vpop.f32.mrf.mxu0
    %v666 = vadd.f32 %v586, %v665
    %v667 = vpop.f32.mrf.mxu0
    %668 = vdwg.mxu0
    %v669 = vtanh.pop %v661
    %v670 = vtanh.pop %v666
    %s671 = scalar_lea.vmem %s3, 96
    %v672 = vld [vmem:[%s671] sm:$0xff]
    %v673 = vld [vmem:[%s671 + $0x8] sm:$0xff]
    %s674 = scalar_lea.vmem %s4, 96
    %v675 = vld [vmem:[%s674] sm:$0xff]
    %v676 = vld [vmem:[%s674 + $0x8] sm:$0xff]
    %678 = vset.pattern.permute.xlu0 0
    %679 = vperm.xlu0 %678, %v675
    %v680 = vpop.permute.xlu0 %679
    %683 = vset.pattern.permute.xlu0 0
    %684 = vperm.xlu0 %683, %v676
    %v685 = vpop.permute.xlu0 %684
    %v688 = vsel %vm92, %v672, 0
    %v691 = vsel %vm92, %v673, 0
    %693 = vmatprep.subr.mxu0 0.0
    %694 = vmatpush1.msra.mxu0 0.0
    %695 = vmatprep.subr.mxu0 0.0
    %696 = vmatpush1.msra.mxu0 0.0
    %697 = vmatprep.subr.mxu0 0.0
    %698 = vmatpush1.msra.mxu0 0.0
    %699 = vmatprep.subr.mxu0 0.0
    %700 = vmatpush1.msra.mxu0 0.0
    %701 = vmatprep.subr.mxu0 0.0
    %702 = vmatpush1.msra.mxu0 0.0
    %703 = vmatprep.subr.mxu0 0.0
    %704 = vmatpush1.msra.mxu0 0.0
    %705 = vmatprep.subr.mxu0 0.0
    %706 = vmatpush1.msra.mxu0 0.0
    %707 = vmatprep.subr.mxu0 0.0
    %708 = vmatpush1.msra.mxu0 0.0
    %709 = vmatprep.subr.mxu0 0.0
    %710 = vmatpush1.msra.mxu0 0.0
    %711 = vmatprep.subr.mxu0 0.0
    %712 = vmatpush1.msra.mxu0 0.0
    %713 = vmatprep.subr.mxu0 0.0
    %714 = vmatpush1.msra.mxu0 0.0
    %715 = vmatprep.subr.mxu0 0.0
    %716 = vmatpush1.msra.mxu0 0.0
    %717 = vmatprep.subr.mxu0 0.0
    %718 = vmatpush1.msra.mxu0 0.0
    %719 = vmatprep.subr.mxu0 0.0
    %720 = vmatpush1.msra.mxu0 0.0
    %721 = vmatprep.subr.mxu0 0.0
    %722 = vmatpush1.msra.mxu0 %v670
    %723 = vmatprep.subr.mxu0 0.0
    %724 = vmatpush1.msra.mxu0 %v669
    %725 = vmatprep.subr.mxu0 0.0
    %726 = vmatpush2.msra.mxu0 0.0
    %727 = vmatprep.subr.mxu0 0.0
    %728 = vmatpush2.msra.mxu0 0.0
    %729 = vmatprep.subr.mxu0 0.0
    %730 = vmatpush2.msra.mxu0 0.0
    %731 = vmatprep.subr.mxu0 0.0
    %732 = vmatpush2.msra.mxu0 0.0
    %733 = vmatprep.subr.mxu0 0.0
    %734 = vmatpush2.msra.mxu0 0.0
    %735 = vmatprep.subr.mxu0 0.0
    %736 = vmatpush2.msra.mxu0 0.0
    %737 = vmatprep.subr.mxu0 0.0
    %738 = vmatpush2.msra.mxu0 0.0
    %739 = vmatprep.subr.mxu0 0.0
    %740 = vmatpush2.msra.mxu0 0.0
    %741 = vmatprep.subr.mxu0 0.0
    %742 = vmatpush2.msra.mxu0 0.0
    %743 = vmatprep.subr.mxu0 0.0
    %744 = vmatpush2.msra.mxu0 0.0
    %745 = vmatprep.subr.mxu0 0.0
    %746 = vmatpush2.msra.mxu0 0.0
    %747 = vmatprep.subr.mxu0 0.0
    %748 = vmatpush2.msra.mxu0 0.0
    %749 = vmatprep.subr.mxu0 0.0
    %750 = vmatpush2.msra.mxu0 0.0
    %751 = vmatprep.subr.mxu0 0.0
    %752 = vmatpush2.msra.mxu0 0.0
    %753 = vmatprep.subr.mxu0 0.0
    %754 = vmatpush2.msra.mxu0 0.0
    %755 = vmatprep.subr.mxu0 0.0
    %756 = vmatpush2.msra.mxu0 0.0
    %757 = vmatprep.mubr.f32.mxu0 0.0
    %758 = vmatmul.mubr.f32.gmra.mxu0 %v688
    %v759 = vpop.f32.mrf.mxu0
    %v760 = vadd.f32 %v680, %v759
    %v761 = vpop.f32.mrf.mxu0
    %762 = vmatprep.mubr.f32.mxu0 0.0
    %763 = vmatmul.mubr.f32.gmra.mxu0 %v691
    %v764 = vpop.f32.mrf.mxu0
    %v765 = vadd.f32 %v685, %v764
    %v766 = vpop.f32.mrf.mxu0
    %767 = vdwg.mxu0
    %v768 = vtanh.pop %v760
    %v769 = vtanh.pop %v765
    %v770 = vld [vmem:[%s5] sm:$0x1]
    %v771 = vld [vmem:[#allocation2] sm:$0x1]
    %773 = vset.pattern.permute.xlu0 0
    %774 = vperm.xlu0 %773, %v771
    %v775 = vpop.permute.xlu0 %774
    %v777 = vlaneseq
    %v778 = vshrl.u32 %v777, 7
    %v779 = vsub.s32 0, %v778
    %v780 = vrot.slane %v775, %v779
    %v782 = vsel %vm92, %v770, 0
    %784 = vmatprep.subr.mxu0 0.0
    %785 = vmatpush1.msra.mxu0 0.0
    %786 = vmatprep.subr.mxu0 0.0
    %787 = vmatpush1.msra.mxu0 0.0
    %788 = vmatprep.subr.mxu0 0.0
    %789 = vmatpush1.msra.mxu0 0.0
    %790 = vmatprep.subr.mxu0 0.0
    %791 = vmatpush1.msra.mxu0 0.0
    %792 = vmatprep.subr.mxu0 0.0
    %793 = vmatpush1.msra.mxu0 0.0
    %794 = vmatprep.subr.mxu0 0.0
    %795 = vmatpush1.msra.mxu0 0.0
    %796 = vmatprep.subr.mxu0 0.0
    %797 = vmatpush1.msra.mxu0 0.0
    %798 = vmatprep.subr.mxu0 0.0
    %799 = vmatpush1.msra.mxu0 0.0
    %800 = vmatprep.subr.mxu0 0.0
    %801 = vmatpush1.msra.mxu0 0.0
    %802 = vmatprep.subr.mxu0 0.0
    %803 = vmatpush1.msra.mxu0 0.0
    %804 = vmatprep.subr.mxu0 0.0
    %805 = vmatpush1.msra.mxu0 0.0
    %806 = vmatprep.subr.mxu0 0.0
    %807 = vmatpush1.msra.mxu0 0.0
    %808 = vmatprep.subr.mxu0 0.0
    %809 = vmatpush1.msra.mxu0 0.0
    %810 = vmatprep.subr.mxu0 0.0
    %811 = vmatpush1.msra.mxu0 0.0
    %812 = vmatprep.subr.mxu0 0.0
    %813 = vmatpush1.msra.mxu0 %v769
    %814 = vmatprep.subr.mxu0 0.0
    %815 = vmatpush1.msra.mxu0 %v768
    %816 = vmatprep.subr.mxu0 0.0
    %817 = vmatpush2.msra.mxu0 0.0
    %818 = vmatprep.subr.mxu0 0.0
    %819 = vmatpush2.msra.mxu0 0.0
    %820 = vmatprep.subr.mxu0 0.0
    %821 = vmatpush2.msra.mxu0 0.0
    %822 = vmatprep.subr.mxu0 0.0
    %823 = vmatpush2.msra.mxu0 0.0
    %824 = vmatprep.subr.mxu0 0.0
    %825 = vmatpush2.msra.mxu0 0.0
    %826 = vmatprep.subr.mxu0 0.0
    %827 = vmatpush2.msra.mxu0 0.0
    %828 = vmatprep.subr.mxu0 0.0
    %829 = vmatpush2.msra.mxu0 0.0
    %830 = vmatprep.subr.mxu0 0.0
    %831 = vmatpush2.msra.mxu0 0.0
    %832 = vmatprep.subr.mxu0 0.0
    %833 = vmatpush2.msra.mxu0 0.0
    %834 = vmatprep.subr.mxu0 0.0
    %835 = vmatpush2.msra.mxu0 0.0
    %836 = vmatprep.subr.mxu0 0.0
    %837 = vmatpush2.msra.mxu0 0.0
    %838 = vmatprep.subr.mxu0 0.0
    %839 = vmatpush2.msra.mxu0 0.0
    %840 = vmatprep.subr.mxu0 0.0
    %841 = vmatpush2.msra.mxu0 0.0
    %842 = vmatprep.subr.mxu0 0.0
    %843 = vmatpush2.msra.mxu0 0.0
    %844 = vmatprep.subr.mxu0 0.0
    %845 = vmatpush2.msra.mxu0 0.0
    %846 = vmatprep.subr.mxu0 0.0
    %847 = vmatpush2.msra.mxu0 0.0
    %848 = vmatprep.mubr.f32.mxu0 0.0
    %849 = vmatmul.mubr.f32.gmra.mxu0 %v782
    %v850 = vpop.f32.mrf.mxu0
    %v851 = vadd.f32 %v780, %v850
    %v852 = vpop.f32.mrf.mxu0
    %853 = vdwg.mxu0
    %854 = vst [vmem:[#allocation3] sm:$0x1] %v851
    // Predicated region
    $region30: #{tpu_custom_call.1} parent=1 // pred_check
      _
    $region31: #{tpu_custom_call.1} parent=1 // pred_check_branch
      %856 = sbr.rel (0) target = $region33
    $region32: #{tpu_custom_call.1} parent=1 // pred_region
      %s858 = ssub.s32 16, 16
      %859 = vsyncadd [#allocation4], %s858
      %s861 = sshll.u32 [#allocation3], 4
      %s862 = int_to_ptr.vmem [resolvable:$true] %s861
      %864 = dma.vmem_to_hbm [thread:$0]  %s862, 16, %s7, [#allocation4]
    $region33: #{tpu_custom_call.1} parent=1 // pred_fallthru
      _
    // Predicated region
    $region34: #{tpu_custom_call.1} parent=1 // pred_check
      _
    $region35: #{tpu_custom_call.1} parent=1 // pred_check_branch
      %866 = sbr.rel (0) target = $region37
    $region36: #{tpu_custom_call.1} parent=1 // pred_region
      %867 = dma.done [#allocation4], 16
    $region37: #{tpu_custom_call.1} parent=1 // pred_fallthru
      _
    %868 = vsyncpa [#allocation4], 1

</llo_original>
